<compile_context>
chip_gen: v7x
topology: tpu7x:2x2x1
jax: 0.10.0
libtpu: 0.0.40
codegen_flags: <defaults>
</compile_context>

<pallas_src>
import math

import jax
import jax.numpy as jnp
from jax import lax
from jax.experimental import pallas as pl
from jax.experimental.pallas import tpu as pltpu


def _attn_kernel(gamma_ref, xf_ref, xq_ref, wq_ref, wkv_ref, wo_ref, o_ref):
    # gamma_ref : SMEM (1,)            gamma * 0.05 (pre-folded on host)
    # xf_ref    : VMEM (1, C, S)       full spatial extent (for K / V)
    # xq_ref    : VMEM (1, C, QBLK)    query block (for Q and the residual)
    # wq_ref    : VMEM (R, C)  bf16    1/sqrt(R) pre-folded
    # wkv_ref   : VMEM (2R, C) bf16    rows [0:R] = Wk, rows [R:2R] = Wv
    # wo_ref    : VMEM (C, R)  bf16
    # o_ref     : VMEM (1, C, QBLK)    out = x + gamma*0.05*proj
    r = wo_ref.shape[1]

    x_full = xf_ref[0]                                       # (C, S)    f32
    x_q = xq_ref[0]                                          # (C, QBLK) f32

    # Fused K/V projection (1x1 convs == channel matmuls), f32 accumulation.
    kv = jnp.dot(wkv_ref[...], x_full.astype(jnp.bfloat16),
                 preferred_element_type=jnp.float32)         # (2R, S)
    k_bf = kv[0:r].astype(jnp.bfloat16)                      # (R, S)
    v_bf = kv[r:2 * r].astype(jnp.bfloat16)                  # (R, S)

    # Q projection for this query block only.
    q = jnp.dot(wq_ref[...], x_q.astype(jnp.bfloat16),
                preferred_element_type=jnp.float32)          # (R, QBLK)
    q_bf = q.astype(jnp.bfloat16)

    # scores[i, j] = sum_r q[r, i] * k[r, j]  -> (QBLK, S), lane-dense last dim.
    s = lax.dot_general(q_bf, k_bf, (((0,), (0,)), ((), ())),
                        preferred_element_type=jnp.float32)

    # Softmax over the key axis, kept in f32.
    s = s - jnp.max(s, axis=-1, keepdims=True)
    p = jnp.exp(s)
    p = p * pl.reciprocal(jnp.sum(p, axis=-1, keepdims=True), approx=True)

    # out[r, i] = sum_j v[r, j] * p[i, j]  == torch.bmm(v, attn^T) -> (R, QBLK)
    out = lax.dot_general(v_bf, p.astype(jnp.bfloat16),
                          (((1,), (1,)), ((), ())),
                          preferred_element_type=jnp.float32)

    # Output projection (1x1 conv): (C, R) @ (R, QBLK) -> (C, QBLK).
    proj = jnp.dot(wo_ref[...], out.astype(jnp.bfloat16),
                   preferred_element_type=jnp.float32)

    # Residual in f32:  x + (gamma * 0.05) * proj.
    # TODO(synk): training-mode Dropout2d not implemented (eval semantics only).
    o_ref[0] = (x_q + gamma_ref[0] * proj).astype(o_ref.dtype)


def lightweight_self_attention(x_nchw, wq, wk, wv, wo, gamma):
    """x_nchw: (B, C, H, W) float32.  Weights in PyTorch conv layout:
       wq/wk/wv: (R, C, 1, 1), wo: (C, R, 1, 1), gamma: (1,)."""
    B, C, H, W = x_nchw.shape
    # TODO(synk): avg_pool2d + bilinear-upsample branch (H or W > 24) not implemented.
    assert H <= 24 and W <= 24, "pooling branch not implemented"
    S = H * W
    R = wq.shape[0]

    # Query block: 128 gives unmasked, lane-dense output stores; fall back to a
    # single block when S is not a multiple of 128.
    qblk = 128 if S % 128 == 0 else S
    n_q = S // qblk

    # NCHW -> (B, C, S): free reshape, no transpose.
    x_flat = x_nchw.reshape(B, C, S)

    # 1x1 convs -> (out, in) matrices; fold 1/sqrt(R) into Wq, fuse K/V, and
    # pre-cast matmul weights to bf16 (f32 accumulation inside the kernel).
    scale = 1.0 / math.sqrt(float(R))
    wq_m = (wq.reshape(R, C) * scale).astype(jnp.bfloat16)           # (R, C)
    wkv_m = jnp.concatenate([wk.reshape(R, C), wv.reshape(R, C)],
                            axis=0).astype(jnp.bfloat16)             # (2R, C)
    wo_m = wo.reshape(C, R).astype(jnp.bfloat16)                     # (C, R)
    g_scaled = (gamma.reshape(1) * 0.05).astype(jnp.float32)         # gamma*0.05

    out_flat = pl.pallas_call(
        _attn_kernel,
        out_shape=jax.ShapeDtypeStruct((B, C, S), x_flat.dtype),
        grid_spec=pltpu.PrefetchScalarGridSpec(
            num_scalar_prefetch=0,
            grid=(B, n_q),
            in_specs=[
                pl.BlockSpec(memory_space=pltpu.SMEM),                  # gamma*0.05
                pl.BlockSpec((1, C, S), lambda b, qi: (b, 0, 0)),       # x (K/V)
                pl.BlockSpec((1, C, qblk), lambda b, qi: (b, 0, qi)),   # x (Q/resid)
                pl.BlockSpec((R, C), lambda b, qi: (0, 0)),             # Wq*scale
                pl.BlockSpec((2 * R, C), lambda b, qi: (0, 0)),         # [Wk; Wv]
                pl.BlockSpec((C, R), lambda b, qi: (0, 0)),             # Wo
            ],
            out_specs=pl.BlockSpec((1, C, qblk), lambda b, qi: (b, 0, qi)),
        ),
        compiler_params=pltpu.CompilerParams(
            dimension_semantics=("parallel", "parallel")),
    )(g_scaled, x_flat, x_flat, wq_m, wkv_m, wo_m)

    # (B, C, S) -> NCHW: free reshape.
    return out_flat.reshape(B, C, H, W)


def _reference(x, wq, wk, wv, wo, gamma):
    """Pure-JAX f32 reference of the PyTorch forward (no-pooling branch)."""
    B, C, H, W = x.shape
    S = H * W
    R = wq.shape[0]
    xf = x.reshape(B, C, S).astype(jnp.float32)
    q = jnp.einsum('rc,bcs->brs', wq.reshape(R, C), xf)
    k = jnp.einsum('rc,bcs->brs', wk.reshape(R, C), xf)
    v = jnp.einsum('rc,bcs->brs', wv.reshape(R, C), xf)
    attn = jnp.einsum('bri,brj->bij', q, k) / math.sqrt(float(R))
    attn = jax.nn.softmax(attn, axis=-1)
    out = jnp.einsum('brj,bij->bri', v, attn)
    proj = jnp.einsum('cr,bri->bci', wo.reshape(C, R), out)
    return x + gamma.reshape(()) * proj.reshape(B, C, H, W) * 0.05


def _xavier_normal(key, shape, gain):
    # PyTorch xavier_normal_ for conv weight (out, in, 1, 1): fan_in=in, fan_out=out
    fan_out, fan_in = shape[0], shape[1]
    std = gain * math.sqrt(2.0 / (fan_in + fan_out))
    return std * jax.random.normal(key, shape, dtype=jnp.float32)


if __name__ == "__main__":
    # Module config: channels=4, reduction=16 -> reduced_ch = max(4//16, 8) = 8
    B, C, H, W = 2, 4, 16, 16
    REDUCED = max(C // 16, 8)

    key = jax.random.PRNGKey(0)
    kx, kq, kk, kv, ko = jax.random.split(key, 5)

    x = jax.random.normal(kx, (B, C, H, W), dtype=jnp.float32)

    # Deterministic parameter init (mirrors nn.init.xavier_normal_(gain=0.1))
    wq = _xavier_normal(kq, (REDUCED, C, 1, 1), gain=0.1)
    wk = _xavier_normal(kk, (REDUCED, C, 1, 1), gain=0.1)
    wv = _xavier_normal(kv, (REDUCED, C, 1, 1), gain=0.1)
    wo = _xavier_normal(ko, (C, REDUCED, 1, 1), gain=0.1)
    gamma0 = jnp.zeros((1,), dtype=jnp.float32)     # nn.Parameter(torch.zeros(1))

    # Run with the module's initial parameters.
    out = lightweight_self_attention(x, wq, wk, wv, wo, gamma0)
    jax.block_until_ready(out)
    assert out.shape == (B, C, H, W)

    # Sanity check the attention path with a non-zero gamma vs pure-JAX f32 ref.
    gamma1 = jnp.full((1,), 1.0, dtype=jnp.float32)
    out1 = lightweight_self_attention(x, wq, wk, wv, wo, gamma1)
    ref1 = _reference(x, wq, wk, wv, wo, gamma1)
    jax.block_until_ready((out1, ref1))
    err = float(jnp.max(jnp.abs(out1 - ref1)))
    branch = float(jnp.max(jnp.abs(ref1 - x)))
    assert err <= 0.1 * branch + 2e-5, (err, branch)

    print("KERNEL_OK")
</pallas_src>

<mosaic_0001>
module attributes {stable_mosaic.version = 11 : i64} {
  func.func @_attn_kernel(%arg0: i32, %arg1: i32, %arg2: memref<1xf32, #tpu.memory_space<smem>>, %arg3: memref<1x4x256xf32, #tpu.memory_space<vmem>>, %arg4: memref<1x4x128xf32, #tpu.memory_space<vmem>>, %arg5: memref<8x4xbf16, #tpu.memory_space<vmem>>, %arg6: memref<16x4xbf16, #tpu.memory_space<vmem>>, %arg7: memref<4x8xbf16, #tpu.memory_space<vmem>>, %arg8: memref<1x4x128xf32, #tpu.memory_space<vmem>>) attributes {dimension_semantics = [#tpu.dimension_semantics<parallel>, #tpu.dimension_semantics<parallel>], iteration_bounds = array<i64: 2, 2>, scalar_prefetch = 0 : i64, scratch_operands = 0 : i64, tpu.core_type = #tpu.core_type<tc>, window_params = [{transform_indices = @transform_0, window_bounds = array<i64: 1>}, {transform_indices = @transform_1, window_bounds = array<i64: 1, 4, 256>}, {transform_indices = @transform_2, window_bounds = array<i64: 1, 4, 128>}, {pipeline_mode = #tpu.pipeline_mode<synchronous>, transform_indices = @transform_3, window_bounds = array<i64: 8, 4>}, {pipeline_mode = #tpu.pipeline_mode<synchronous>, transform_indices = @transform_4, window_bounds = array<i64: 16, 4>}, {pipeline_mode = #tpu.pipeline_mode<synchronous>, transform_indices = @transform_5, window_bounds = array<i64: 4, 8>}, {transform_indices = @transform_6, window_bounds = array<i64: 1, 4, 128>}]} {
    %c0 = arith.constant 0 : index
    %c0_0 = arith.constant 0 : index
    %c0_1 = arith.constant 0 : index
    %0 = vector.load %arg3[%c0, %c0_0, %c0_1] : memref<1x4x256xf32, #tpu.memory_space<vmem>>, vector<1x4x256xf32>
    %1 = vector.shape_cast %0 : vector<1x4x256xf32> to vector<4x256xf32>
    %c0_2 = arith.constant 0 : index
    %c0_3 = arith.constant 0 : index
    %c0_4 = arith.constant 0 : index
    %2 = vector.load %arg4[%c0_2, %c0_3, %c0_4] : memref<1x4x128xf32, #tpu.memory_space<vmem>>, vector<1x4x128xf32>
    %3 = vector.shape_cast %2 : vector<1x4x128xf32> to vector<4x128xf32>
    %c0_5 = arith.constant 0 : index
    %c0_6 = arith.constant 0 : index
    %4 = vector.load %arg6[%c0_5, %c0_6] : memref<16x4xbf16, #tpu.memory_space<vmem>>, vector<16x4xbf16>
    %5 = arith.truncf %1 : vector<4x256xf32> to vector<4x256xbf16>
    %cst = arith.constant dense<0.000000e+00> : vector<16x256xf32>
    %6 = tpu.matmul %4, %5, %cst {dimension_numbers = #tpu.dot_dimension_numbers<[1], [0], [0], [1], [0, 0, 1, 1], [], []>} : vector<16x4xbf16>, vector<4x256xbf16>, vector<16x256xf32> -> vector<16x256xf32>
    %7 = vector.extract_strided_slice %6 {offsets = [0, 0], sizes = [8, 256], strides = [1, 1]} : vector<16x256xf32> to vector<8x256xf32>
    %8 = arith.truncf %7 : vector<8x256xf32> to vector<8x256xbf16>
    %9 = vector.extract_strided_slice %6 {offsets = [8, 0], sizes = [8, 256], strides = [1, 1]} : vector<16x256xf32> to vector<8x256xf32>
    %10 = arith.truncf %9 : vector<8x256xf32> to vector<8x256xbf16>
    %c0_7 = arith.constant 0 : index
    %c0_8 = arith.constant 0 : index
    %11 = vector.load %arg5[%c0_7, %c0_8] : memref<8x4xbf16, #tpu.memory_space<vmem>>, vector<8x4xbf16>
    %12 = arith.truncf %3 : vector<4x128xf32> to vector<4x128xbf16>
    %cst_9 = arith.constant dense<0.000000e+00> : vector<8x128xf32>
    %13 = tpu.matmul %11, %12, %cst_9 {dimension_numbers = #tpu.dot_dimension_numbers<[1], [0], [0], [1], [0, 0, 1, 1], [], []>} : vector<8x4xbf16>, vector<4x128xbf16>, vector<8x128xf32> -> vector<8x128xf32>
    %14 = arith.truncf %13 : vector<8x128xf32> to vector<8x128xbf16>
    %cst_10 = arith.constant dense<0.000000e+00> : vector<128x256xf32>
    %15 = tpu.matmul %14, %8, %cst_10 {dimension_numbers = #tpu.dot_dimension_numbers<[0], [0], [1], [1], [0, 1, 1, 1], [], []>} : vector<8x128xbf16>, vector<8x256xbf16>, vector<128x256xf32> -> vector<128x256xf32>
    %cst_11 = arith.constant dense<0xFF800000> : vector<128xf32>
    %16 = vector.multi_reduction <maximumf>, %15, %cst_11 [1] : vector<128x256xf32> to vector<128xf32>
    %17 = vector.shape_cast %16 : vector<128xf32> to vector<128x1xf32>
    %18 = vector.broadcast %17 : vector<128x1xf32> to vector<128x256xf32>
    %19 = arith.subf %15, %18 : vector<128x256xf32>
    %20 = math.exp %19 : vector<128x256xf32>
    %cst_12 = arith.constant dense<0.000000e+00> : vector<128xf32>
    %21 = vector.multi_reduction <add>, %20, %cst_12 [1] : vector<128x256xf32> to vector<128xf32>
    %22 = vector.shape_cast %21 : vector<128xf32> to vector<128x1xf32>
    %23 = tpu.reciprocal %22 {approx = true} : vector<128x1xf32> -> vector<128x1xf32>
    %24 = vector.broadcast %23 : vector<128x1xf32> to vector<128x256xf32>
    %25 = arith.mulf %20, %24 : vector<128x256xf32>
    %26 = arith.truncf %25 : vector<128x256xf32> to vector<128x256xbf16>
    %cst_13 = arith.constant dense<0.000000e+00> : vector<8x128xf32>
    %27 = tpu.matmul %10, %26, %cst_13 {dimension_numbers = #tpu.dot_dimension_numbers<[1], [1], [0], [0], [0, 0, 1, 0], [], []>} : vector<8x256xbf16>, vector<128x256xbf16>, vector<8x128xf32> -> vector<8x128xf32>
    %c0_14 = arith.constant 0 : index
    %c0_15 = arith.constant 0 : index
    %28 = vector.load %arg7[%c0_14, %c0_15] : memref<4x8xbf16, #tpu.memory_space<vmem>>, vector<4x8xbf16>
    %29 = arith.truncf %27 : vector<8x128xf32> to vector<8x128xbf16>
    %cst_16 = arith.constant dense<0.000000e+00> : vector<4x128xf32>
    %30 = tpu.matmul %28, %29, %cst_16 {dimension_numbers = #tpu.dot_dimension_numbers<[1], [0], [0], [1], [0, 0, 1, 1], [], []>} : vector<4x8xbf16>, vector<8x128xbf16>, vector<4x128xf32> -> vector<4x128xf32>
    %c0_17 = arith.constant 0 : index
    %31 = memref.load %arg2[%c0_17] : memref<1xf32, #tpu.memory_space<smem>>
    %32 = vector.broadcast %31 : f32 to vector<4x128xf32>
    %33 = arith.mulf %32, %30 : vector<4x128xf32>
    %34 = arith.addf %3, %33 : vector<4x128xf32>
    %c0_18 = arith.constant 0 : index
    %c0_19 = arith.constant 0 : index
    %c0_20 = arith.constant 0 : index
    %35 = vector.load %arg8[%c0_18, %c0_19, %c0_20] : memref<1x4x128xf32, #tpu.memory_space<vmem>>, vector<1x4x128xf32>
    %36 = vector.shape_cast %35 : vector<1x4x128xf32> to vector<4x128xf32>
    %37 = vector.shape_cast %34 : vector<4x128xf32> to vector<1x4x128xf32>
    tpu.vector_store %arg8[%c0_18, %c0_19, %c0_20], %37 {strides = array<i32>} : memref<1x4x128xf32, #tpu.memory_space<vmem>>, vector<1x4x128xf32>,
    return
  }
  func.func @transform_0(%arg0: i32, %arg1: i32) -> i32 {
    %c0_i32 = arith.constant 0 : i32
    %c0_i32_0 = arith.constant 0 : i32
    return %c0_i32 : i32
  }
  func.func @transform_1(%arg0: i32, %arg1: i32) -> (i32, i32, i32) {
    %c0_i32 = arith.constant 0 : i32
    %c0_i32_0 = arith.constant 0 : i32
    %c0_i32_1 = arith.constant 0 : i32
    return %arg0, %c0_i32, %c0_i32_0 : i32, i32, i32
  }
  func.func @transform_2(%arg0: i32, %arg1: i32) -> (i32, i32, i32) {
    %c0_i32 = arith.constant 0 : i32
    %c0_i32_0 = arith.constant 0 : i32
    return %arg0, %c0_i32, %arg1 : i32, i32, i32
  }
  func.func @transform_3(%arg0: i32, %arg1: i32) -> (i32, i32) {
    %c0_i32 = arith.constant 0 : i32
    %c0_i32_0 = arith.constant 0 : i32
    %c0_i32_1 = arith.constant 0 : i32
    return %c0_i32, %c0_i32_0 : i32, i32
  }
  func.func @transform_4(%arg0: i32, %arg1: i32) -> (i32, i32) {
    %c0_i32 = arith.constant 0 : i32
    %c0_i32_0 = arith.constant 0 : i32
    %c0_i32_1 = arith.constant 0 : i32
    return %c0_i32, %c0_i32_0 : i32, i32
  }
  func.func @transform_5(%arg0: i32, %arg1: i32) -> (i32, i32) {
    %c0_i32 = arith.constant 0 : i32
    %c0_i32_0 = arith.constant 0 : i32
    %c0_i32_1 = arith.constant 0 : i32
    return %c0_i32, %c0_i32_0 : i32, i32
  }
  func.func @transform_6(%arg0: i32, %arg1: i32) -> (i32, i32, i32) {
    %c0_i32 = arith.constant 0 : i32
    %c0_i32_0 = arith.constant 0 : i32
    return %arg0, %c0_i32, %arg1 : i32, i32, i32
  }
}

</mosaic_0001>

<llo_original>
// kernel: tpu_custom_call.1
$region0: #{tpu_custom_call.1}
  #allocation0 [shape = 'u32[]', space=smem, size = 0x4, offset = 0x4, fixed_abs, tag = 'smem constant byte address 0x4 - core index']
  #allocation1 [shape = 'u32[144,128]{1,0:T(1,128)}', space=vmem, size = 0x12000, scoped, tag = 'internal scratch']
  #allocation2 [shape = 'f32[1]{0:T(128)S(6)}', space=smem, size = 0x200, scoped, tag = 'scoped memory for tpu_custom_call.1']
  %s0 = inlined_call_operand.<no memory space> [shape: f32[1], index: 0, kind: input, shape index: {}]
  %s1 = inlined_call_operand.vmem [shape: f32[2,4,256], index: 1, kind: input, shape index: {}]
  %s2 = inlined_call_operand.hbm [shape: f32[2,4,256], index: 2, kind: input, shape index: {}]
  %s3 = inlined_call_operand.vmem [shape: bf16[8,4], index: 3, kind: input, shape index: {}]
  %s4 = inlined_call_operand.vmem [shape: bf16[16,4], index: 4, kind: input, shape index: {}]
  %s5 = inlined_call_operand.vmem [shape: bf16[4,8], index: 5, kind: input, shape index: {}]
  %s6 = inlined_call_operand.hbm [shape: f32[2,4,256], index: 6, kind: output, shape index: {}]
  %s7 = sld [smem:[#allocation0]]
  $region61: #{tpu_custom_call.1} parent=0
    _
  %s9 = ssub.s32 1, %s7
  %s10 = scalar_select 0, %s9, %s7
  %11 = sst [smem:[#allocation2]] %s0
  $region1: #{tpu_custom_call.1} parent=0
    #allocation3 [shape = 'u8[4096]{0}', space=vmem, size = 0x1000, scoped, tag = 'input window, operand 2']
    #allocation4 [shape = 's32[2]{0}', space=sflag, size = 0x8, scoped, tag = 'scoped memory for tpu_custom_call.1']
    #allocation5 [shape = 's32[2]{0}', space=sflag, size = 0x8, scoped, tag = 'scoped memory for tpu_custom_call.1']
    #allocation6 [shape = 'u8[4096]{0}', space=vmem, size = 0x1000, scoped, tag = 'output window, operand 0']
    %12 = vsyncpa [#allocation4], 0
    %s13 = scalar_lea.sflag [#allocation4], 1
    %14 = vsyncpa %s13, 0
    %15 = vsyncpa [#allocation5], 0
    %s16 = scalar_lea.sflag [#allocation5], 1
    %17 = vsyncpa %s16, 0
    loop: start=0, step=1, limit=6
    $region2: #{tpu_custom_call.1} parent=1 // loop_pre_header
      _
    $region3: #{tpu_custom_call.1} parent=1 // loop_header
      %s19 = sphi 0, %s23
      %p20 = scmp.ge.s32.totalorder %s19, 6
      %s26 = sphi 0, %s38
      %s27 = sphi 0, %s34
      %s28 = sphi 0, %s26
      %s29 = sphi 0, %s27
      %s30 = sphi 0, %s28
      %s31 = sphi 0, %s29
      %s39 = sphi 0, %s39
      %s41 = sphi 0, %s39
      %s42 = sphi 0, %s41
      %s56 = sphi 0, %s42
      %s62 = sphi 0, %s64
      %s65 = sphi 0, %s62
      %s66 = sphi 0, %s65
      %s82 = sphi 0, %s66
      %s90 = sphi 0, %s92
      %s93 = sphi 0, %s90
      %s94 = sphi 0, %s93
      %s110 = sphi 0, %s94
      %s114 = sphi 0, %s114
      %s116 = sphi 0, %s114
      %s117 = sphi 0, %s116
      %s131 = sphi 0, %s117
      %s135 = sphi 0, %s135
      %s137 = sphi 0, %s135
      %s138 = sphi 0, %s137
      %s152 = sphi 0, %s138
      %s156 = sphi 0, %s156
      %s158 = sphi 0, %s156
      %s159 = sphi 0, %s158
      %s173 = sphi 0, %s159
      %s181 = sphi 0, %s183
      %s184 = sphi 0, %s181
      %s185 = sphi 0, %s184
      %s201 = sphi 0, %s185
    $region4: #{tpu_custom_call.1} parent=1 // loop_header_branch
      %22 = sbr.rel (%p20) target = $region8
    $region5: #{tpu_custom_call.1} parent=1 // loop_body
      %s24 = ssub.s32 %s19, 1
      %s25 = ssub.s32 %s19, 2
      %s32 = sadd.s32 1, %s27
      %p33 = scmp.ge.s32.totalorder %s32, 2
      %s34 = scalar_select %p33, 0, %s32
      %s35 = sadd.s32 1, %s26
      %s36 = scalar_select %p33, %s35, %s26
      %p37 = scmp.ge.s32.totalorder %s36, 2
      %s38 = scalar_select %p37, 0, %s36
      %s40 = sadd.s32 %s39, 1
      %p43 = scmp.eq.s32.totalorder %s19, 3
      %p44 = scmp.ne.s32.totalorder %s39, %s41
      %p45 = scmp.eq.s32.totalorder %s19, 0
      %p46 = por %p44, %p45
      %p47 = scmp.ne.s32.totalorder %s39, %s41
      %p48 = scmp.eq.s32.totalorder %s24, 3
      %p49 = por %p47, %p48
      %p50 = scmp.ne.s32.totalorder %s41, %s42
      %p51 = scmp.eq.s32.totalorder %s24, 0
      %p52 = por %p50, %p51
      %p53 = scmp.ne.s32.totalorder %s41, %s42
      %p54 = scmp.eq.s32.totalorder %s25, 3
      %p55 = por %p53, %p54
      %p57 = scmp.ne.s32.totalorder %s42, %s56
      %p58 = scmp.eq.s32.totalorder %s25, 0
      %p59 = por %p57, %p58
      %s60 = ssub.s32 %s26, %s38
      %p61 = scmp.eq.s32.totalorder %s60, 0
      %s63 = sadd.s32 %s62, 1
      %s64 = scalar_select %p61, %s62, %s63
      %p67 = pneg %p61
      %p68 = scmp.eq.s32.totalorder %s19, 3
      %p69 = por %p67, %p68
      %p70 = scmp.ne.s32.totalorder %s62, %s65
      %p71 = scmp.eq.s32.totalorder %s19, 0
      %p72 = por %p70, %p71
      %p73 = scmp.ne.s32.totalorder %s62, %s65
      %p74 = scmp.eq.s32.totalorder %s24, 3
      %p75 = por %p73, %p74
      %p76 = scmp.ne.s32.totalorder %s65, %s66
      %p77 = scmp.eq.s32.totalorder %s24, 0
      %p78 = por %p76, %p77
      %p79 = scmp.ne.s32.totalorder %s65, %s66
      %p80 = scmp.eq.s32.totalorder %s25, 3
      %p81 = por %p79, %p80
      %p83 = scmp.ne.s32.totalorder %s66, %s82
      %p84 = scmp.eq.s32.totalorder %s25, 0
      %p85 = por %p83, %p84
      %s86 = ssub.s32 %s26, %s38
      %s87 = ssub.s32 %s27, %s34
      %s88 = sor.u32 %s86, %s87
      %p89 = scmp.eq.s32.totalorder %s88, 0
      %s91 = sadd.s32 %s90, 1
      %s92 = scalar_select %p89, %s90, %s91
      %p95 = pneg %p89
      %p96 = scmp.eq.s32.totalorder %s19, 3
      %p97 = por %p95, %p96
      %p98 = scmp.ne.s32.totalorder %s90, %s93
      %p99 = scmp.eq.s32.totalorder %s19, 0
      %p100 = por %p98, %p99
      %p101 = scmp.ne.s32.totalorder %s90, %s93
      %p102 = scmp.eq.s32.totalorder %s24, 3
      %p103 = por %p101, %p102
      %p104 = scmp.ne.s32.totalorder %s93, %s94
      %p105 = scmp.eq.s32.totalorder %s24, 0
      %p106 = por %p104, %p105
      %p107 = scmp.ne.s32.totalorder %s93, %s94
      %p108 = scmp.eq.s32.totalorder %s25, 3
      %p109 = por %p107, %p108
      %p111 = scmp.ne.s32.totalorder %s94, %s110
      %p112 = scmp.eq.s32.totalorder %s25, 0
      %p113 = por %p111, %p112
      %s115 = sadd.s32 %s114, 1
      %p118 = scmp.eq.s32.totalorder %s19, 3
      %p119 = scmp.ne.s32.totalorder %s114, %s116
      %p120 = scmp.eq.s32.totalorder %s19, 0
      %p121 = por %p119, %p120
      %p122 = scmp.ne.s32.totalorder %s114, %s116
      %p123 = scmp.eq.s32.totalorder %s24, 3
      %p124 = por %p122, %p123
      %p125 = scmp.ne.s32.totalorder %s116, %s117
      %p126 = scmp.eq.s32.totalorder %s24, 0
      %p127 = por %p125, %p126
      %p128 = scmp.ne.s32.totalorder %s116, %s117
      %p129 = scmp.eq.s32.totalorder %s25, 3
      %p130 = por %p128, %p129
      %p132 = scmp.ne.s32.totalorder %s117, %s131
      %p133 = scmp.eq.s32.totalorder %s25, 0
      %p134 = por %p132, %p133
      %s136 = sadd.s32 %s135, 1
      %p139 = scmp.eq.s32.totalorder %s19, 3
      %p140 = scmp.ne.s32.totalorder %s135, %s137
      %p141 = scmp.eq.s32.totalorder %s19, 0
      %p142 = por %p140, %p141
      %p143 = scmp.ne.s32.totalorder %s135, %s137
      %p144 = scmp.eq.s32.totalorder %s24, 3
      %p145 = por %p143, %p144
      %p146 = scmp.ne.s32.totalorder %s137, %s138
      %p147 = scmp.eq.s32.totalorder %s24, 0
      %p148 = por %p146, %p147
      %p149 = scmp.ne.s32.totalorder %s137, %s138
      %p150 = scmp.eq.s32.totalorder %s25, 3
      %p151 = por %p149, %p150
      %p153 = scmp.ne.s32.totalorder %s138, %s152
      %p154 = scmp.eq.s32.totalorder %s25, 0
      %p155 = por %p153, %p154
      %s157 = sadd.s32 %s156, 1
      %p160 = scmp.eq.s32.totalorder %s19, 3
      %p161 = scmp.ne.s32.totalorder %s156, %s158
      %p162 = scmp.eq.s32.totalorder %s19, 0
      %p163 = por %p161, %p162
      %p164 = scmp.ne.s32.totalorder %s156, %s158
      %p165 = scmp.eq.s32.totalorder %s24, 3
      %p166 = por %p164, %p165
      %p167 = scmp.ne.s32.totalorder %s158, %s159
      %p168 = scmp.eq.s32.totalorder %s24, 0
      %p169 = por %p167, %p168
      %p170 = scmp.ne.s32.totalorder %s158, %s159
      %p171 = scmp.eq.s32.totalorder %s25, 3
      %p172 = por %p170, %p171
      %p174 = scmp.ne.s32.totalorder %s159, %s173
      %p175 = scmp.eq.s32.totalorder %s25, 0
      %p176 = por %p174, %p175
      %s177 = ssub.s32 %s26, %s38
      %s178 = ssub.s32 %s27, %s34
      %s179 = sor.u32 %s177, %s178
      %p180 = scmp.eq.s32.totalorder %s179, 0
      %s182 = sadd.s32 %s181, 1
      %s183 = scalar_select %p180, %s181, %s182
      %p186 = pneg %p180
      %p187 = scmp.eq.s32.totalorder %s19, 3
      %p188 = por %p186, %p187
      %p189 = scmp.ne.s32.totalorder %s181, %s184
      %p190 = scmp.eq.s32.totalorder %s19, 0
      %p191 = por %p189, %p190
      %p192 = scmp.ne.s32.totalorder %s181, %s184
      %p193 = scmp.eq.s32.totalorder %s24, 3
      %p194 = por %p192, %p193
      %p195 = scmp.ne.s32.totalorder %s184, %s185
      %p196 = scmp.eq.s32.totalorder %s24, 0
      %p197 = por %p195, %p196
      %p198 = scmp.ne.s32.totalorder %s184, %s185
      %p199 = scmp.eq.s32.totalorder %s25, 3
      %p200 = por %p198, %p199
      %p202 = scmp.ne.s32.totalorder %s185, %s201
      %p203 = scmp.eq.s32.totalorder %s25, 0
      %p204 = por %p202, %p203
      %p205 = scmp.le.s32.totalorder 1, %s19
      %p206 = scmp.lt.s32.totalorder %s19, 5
      %p207 = pnand %p205, %p206
      %p208 = pneg %p207
      // Predicated region
      $region9: #{tpu_custom_call.1} parent=5 // pred_check
        _
      $region10: #{tpu_custom_call.1} parent=5 // pred_check_branch
        %210 = sbr.rel (%p207) target = $region12
      $region11: #{tpu_custom_call.1} parent=5 // pred_region
        %s211 = ssub.s32 %s19, 1
        // Predicated region
        $region13: #{tpu_custom_call.1} parent=11 // pred_check
          %p212 = pneg %p52
        $region14: #{tpu_custom_call.1} parent=11 // pred_check_branch
          %214 = sbr.rel (%p212) target = $region16
        $region15: #{tpu_custom_call.1} parent=11 // pred_region
          _
        $region16: #{tpu_custom_call.1} parent=11 // pred_fallthru
          _
        // Predicated region
        $region17: #{tpu_custom_call.1} parent=11 // pred_check
          %p215 = pneg %p127
        $region18: #{tpu_custom_call.1} parent=11 // pred_check_branch
          %217 = sbr.rel (%p215) target = $region20
        $region19: #{tpu_custom_call.1} parent=11 // pred_region
          _
        $region20: #{tpu_custom_call.1} parent=11 // pred_fallthru
          _
        // Predicated region
        $region21: #{tpu_custom_call.1} parent=11 // pred_check
          %p218 = pneg %p148
        $region22: #{tpu_custom_call.1} parent=11 // pred_check_branch
          %220 = sbr.rel (%p218) target = $region24
        $region23: #{tpu_custom_call.1} parent=11 // pred_region
          _
        $region24: #{tpu_custom_call.1} parent=11 // pred_fallthru
          _
        // Predicated region
        $region25: #{tpu_custom_call.1} parent=11 // pred_check
          %p221 = pneg %p169
        $region26: #{tpu_custom_call.1} parent=11 // pred_check_branch
          %223 = sbr.rel (%p221) target = $region28
        $region27: #{tpu_custom_call.1} parent=11 // pred_region
          _
        $region28: #{tpu_custom_call.1} parent=11 // pred_fallthru
          _
      $region12: #{tpu_custom_call.1} parent=5 // pred_fallthru
        _
      %p224 = scmp.lt.s32.totalorder %s19, 4
      // Predicated region
      $region29: #{tpu_custom_call.1} parent=5 // pred_check
        %p225 = pneg %p224
      $region30: #{tpu_custom_call.1} parent=5 // pred_check_branch
        %227 = sbr.rel (%p225) target = $region32
      $region31: #{tpu_custom_call.1} parent=5 // pred_region
        // Predicated region
        $region33: #{tpu_custom_call.1} parent=31 // pred_check
          %p228 = pneg %p72
        $region34: #{tpu_custom_call.1} parent=31 // pred_check_branch
          %230 = sbr.rel (%p228) target = $region36
        $region35: #{tpu_custom_call.1} parent=31 // pred_region
          %p231 = scmp.lt.s32.totalorder %s26, 1
          %s232 = scalar_select %p231, %s26, 1
          %s233 = smul.addr %s232, 2
          %s234 = smul.addr %s233, 4
          %s235 = scalar_lea.vmem %s1, %s234
        $region36: #{tpu_custom_call.1} parent=31 // pred_fallthru
          _
        // Predicated region
        $region37: #{tpu_custom_call.1} parent=31 // pred_check
          %p236 = pneg %p100
        $region38: #{tpu_custom_call.1} parent=31 // pred_check_branch
          %238 = sbr.rel (%p236) target = $region40
        $region39: #{tpu_custom_call.1} parent=31 // pred_region
          %s239 = sand.u32 %s90, 1
          %s240 = scalar_lea.sflag [#allocation4], %s239
          %s241 = sand.u32 %s90, 1
          %s242 = smul.addr %s241, 4
          %s243 = scalar_lea.vmem [#allocation3], %s242
          %s245 = ssub.s32 64, 64
          %246 = vsyncadd %s240, %s245
          %s247 = smul.addr %s26, 2
          %s248 = sadd.s32 %s27, %s247
          %s249 = smul.addr %s248, 64
          %s250 = scalar_lea.hbm %s2, %s249
          %s252 = sshll.u32 %s243, 4
          %s253 = int_to_ptr.vmem [resolvable:$true] %s252
          %255 = dma.hbm_to_vmem [thread:$0]  %s250, 64, %s253, %s240
        $region40: #{tpu_custom_call.1} parent=31 // pred_fallthru
          _
      $region32: #{tpu_custom_call.1} parent=5 // pred_fallthru
        _
      %p256 = scmp.le.s32.totalorder 1, %s19
      %p257 = scmp.lt.s32.totalorder %s19, 5
      %p258 = pnand %p256, %p257
      %p259 = pneg %p258
      // Predicated region
      $region41: #{tpu_custom_call.1} parent=5 // pred_check
        _
      $region42: #{tpu_custom_call.1} parent=5 // pred_check_branch
        %261 = sbr.rel (%p258) target = $region44
      $region43: #{tpu_custom_call.1} parent=5 // pred_region
        %s262 = ssub.s32 %s19, 1
        %s263 = sand.u32 %s93, 1
        %s264 = scalar_lea.sflag [#allocation4], %s263
        %s265 = sand.u32 %s93, 1
        %s266 = smul.addr %s265, 4
        %s267 = scalar_lea.vmem [#allocation3], %s266
        // Predicated region
        $region45: #{tpu_custom_call.1} parent=43 // pred_check
          %p268 = pneg %p106
        $region46: #{tpu_custom_call.1} parent=43 // pred_check_branch
          %270 = sbr.rel (%p268) target = $region48
        $region47: #{tpu_custom_call.1} parent=43 // pred_region
          %271 = dma.done %s264, 64
        $region48: #{tpu_custom_call.1} parent=43 // pred_fallthru
          _
        %p272 = pneg %p52
        %p273 = pneg %p49
        %p274 = scmp.lt.s32.totalorder %s28, 1
        %s275 = scalar_select %p274, %s28, 1
        %s276 = smul.addr %s275, 2
        %s277 = smul.addr %s276, 4
        %s278 = scalar_lea.vmem %s1, %s277
        %p279 = pneg %p78
        %p280 = pneg %p75
        %s281 = sand.u32 %s93, 1
        %s282 = scalar_lea.sflag [#allocation4], %s281
        %s283 = sand.u32 %s93, 1
        %s284 = smul.addr %s283, 4
        %s285 = scalar_lea.vmem [#allocation3], %s284
        %p286 = pneg %p106
        %p287 = pneg %p103
        %p288 = pneg %p127
        %p289 = pneg %p124
        %p290 = pneg %p148
        %p291 = pneg %p145
        %p292 = pneg %p169
        %p293 = pneg %p166
        %p294 = pneg %p197
        %p295 = pneg %p194
        %s296 = sand.u32 %s184, 1
        %s297 = scalar_lea.sflag [#allocation5], %s296
        %s298 = sand.u32 %s184, 1
        %s299 = smul.addr %s298, 4
        %s300 = scalar_lea.vmem [#allocation6], %s299
        %p301 = scmp.lt.s32.totalorder %s28, 1
        %s302 = scalar_select %p301, %s28, 1
        %s303 = smul.addr %s302, 2
        %s304 = smul.addr %s303, 4
        %s305 = scalar_lea.vmem %s1, %s304
        %v307 = vld [vmem:[%s305] sm:$0xff]
        %v308 = vld [vmem:[%s267] sm:$0xf]
        %v309 = vld [vmem:[%s4] sm:$0xf]
        %v310 = vld [vmem:[%s4 + $0x4] sm:$0xf]
        %v312 = vcombine.high %v307, %v307
        %v314 = vpack.c.bf16 %v307, %v307
        %v315 = vpack.c.bf16 %v312, %v312
        %v318 = vunpack.c.l.b16 %v309
        %v319 = vunpack.c.l.b16 %v310
        %v320 = vpack.c.b16 %v319, %v318
        %vm321 = vcmask 31744
        %v323 = vsel %vm321, %v320, 0
        %vm325 = vcmask 1041408
        %v327 = vsel %vm325, %v314, 0
        %v330 = vsel %vm325, %v315, 0
        %332 = vmatprep.subr.bf16.mxu0 %v330
        %333 = vmatpush1.bf16.msra.mxu0 %v327
        %334 = vmatprep.subr.bf16.mxu0 0
        %335 = vmatpush1.bf16.msra.mxu0 0
        %336 = vmatprep.subr.bf16.mxu0 0
        %337 = vmatpush1.bf16.msra.mxu0 0
        %338 = vmatprep.subr.bf16.mxu0 0
        %339 = vmatpush1.bf16.msra.mxu0 0
        %340 = vmatprep.subr.bf16.mxu0 0
        %341 = vmatpush1.bf16.msra.mxu0 0
        %342 = vmatprep.subr.bf16.mxu0 0
        %343 = vmatpush1.bf16.msra.mxu0 0
        %344 = vmatprep.subr.bf16.mxu0 0
        %345 = vmatpush1.bf16.msra.mxu0 0
        %346 = vmatprep.subr.bf16.mxu0 0
        %347 = vmatpush1.bf16.msra.mxu0 0
        %348 = vmatprep.subr.bf16.mxu0 0
        %349 = vmatpush1.bf16.msra.mxu0 0
        %350 = vmatprep.subr.bf16.mxu0 0
        %351 = vmatpush1.bf16.msra.mxu0 0
        %352 = vmatprep.subr.bf16.mxu0 0
        %353 = vmatpush1.bf16.msra.mxu0 0
        %354 = vmatprep.subr.bf16.mxu0 0
        %355 = vmatpush1.bf16.msra.mxu0 0
        %356 = vmatprep.subr.bf16.mxu0 0
        %357 = vmatpush1.bf16.msra.mxu0 0
        %358 = vmatprep.subr.bf16.mxu0 0
        %359 = vmatpush1.bf16.msra.mxu0 0
        %360 = vmatprep.subr.bf16.mxu0 0
        %361 = vmatpush1.bf16.msra.mxu0 0
        %362 = vmatprep.subr.bf16.mxu0 0
        %363 = vmatpush1.bf16.msra.mxu0 0
        %364 = vmatprep.mubr.bf16.mxu0 0
        %365 = vmatmul.mubr.bf16.gmra.mrb[0].mxu0 %v323
        %v366 = vpop.f32.mrb[0].mxu0
        %v367 = vadd.f32 0.0, %v366
        %v368 = vpop.f32.mrb[0].mxu0
        %v369 = vadd.f32 0.0, %v368
        %v370 = vpop.f32.mrb[0].mxu0
        %v371 = vadd.f32 0.0, %v370
        %v372 = vpop.f32.mrb[0].mxu0
        %v373 = vadd.f32 0.0, %v372
        %374 = vdwg.mxu0
        %v375 = vpack.c.bf16 %v367, %v367
        %v376 = vpack.c.bf16 %v369, %v369
        %v377 = vpack.c.bf16 %v371, %v371
        %v378 = vpack.c.bf16 %v373, %v373
        %v379 = vld [vmem:[%s3] sm:$0xf]
        %v380 = vpack.c.bf16 %v308, %v308
        %v382 = vsel %vm321, %v379, 0
        %v385 = vsel %vm325, %v380, 0
        %387 = vmatprep.subr.bf16.mxu0 0
        %388 = vmatpush1.bf16.msra.mxu0 %v385
        %389 = vmatprep.subr.bf16.mxu0 0
        %390 = vmatpush1.bf16.msra.mxu0 0
        %391 = vmatprep.subr.bf16.mxu0 0
        %392 = vmatpush1.bf16.msra.mxu0 0
        %393 = vmatprep.subr.bf16.mxu0 0
        %394 = vmatpush1.bf16.msra.mxu0 0
        %395 = vmatprep.subr.bf16.mxu0 0
        %396 = vmatpush1.bf16.msra.mxu0 0
        %397 = vmatprep.subr.bf16.mxu0 0
        %398 = vmatpush1.bf16.msra.mxu0 0
        %399 = vmatprep.subr.bf16.mxu0 0
        %400 = vmatpush1.bf16.msra.mxu0 0
        %401 = vmatprep.subr.bf16.mxu0 0
        %402 = vmatpush1.bf16.msra.mxu0 0
        %403 = vmatprep.subr.bf16.mxu0 0
        %404 = vmatpush1.bf16.msra.mxu0 0
        %405 = vmatprep.subr.bf16.mxu0 0
        %406 = vmatpush1.bf16.msra.mxu0 0
        %407 = vmatprep.subr.bf16.mxu0 0
        %408 = vmatpush1.bf16.msra.mxu0 0
        %409 = vmatprep.subr.bf16.mxu0 0
        %410 = vmatpush1.bf16.msra.mxu0 0
        %411 = vmatprep.subr.bf16.mxu0 0
        %412 = vmatpush1.bf16.msra.mxu0 0
        %413 = vmatprep.subr.bf16.mxu0 0
        %414 = vmatpush1.bf16.msra.mxu0 0
        %415 = vmatprep.subr.bf16.mxu0 0
        %416 = vmatpush1.bf16.msra.mxu0 0
        %417 = vmatprep.subr.bf16.mxu0 0
        %418 = vmatpush1.bf16.msra.mxu0 0
        %419 = vmatprep.mubr.bf16.mxu0 0
        %420 = vmatmul.mubr.bf16.gmra.mrb[0].mxu0 %v382
        %v421 = vpop.f32.mrb[0].mxu0
        %v422 = vadd.f32 0.0, %v421
        %v423 = vpop.f32.mrb[0].mxu0
        %v424 = vpop.f32.mrb[0].mxu0
        %v425 = vpop.f32.mrb[0].mxu0
        %426 = vdwg.mxu0
        %v427 = vpack.c.bf16 %v422, %v422
        %428 = vxpose.xlu0.c.b16.start [1/8] %v427, 128
        %429 = vxpose.xlu0.c.b16.cont [2/8] 0, 128
        %430 = vxpose.xlu0.c.b16.cont [3/8] 0, 128
        %431 = vxpose.xlu0.c.b16.cont [4/8] 0, 128
        %432 = vxpose.xlu0.c.b16.cont [5/8] 0, 128
        %433 = vxpose.xlu0.c.b16.cont [6/8] 0, 128
        %434 = vxpose.xlu0.c.b16.cont [7/8] 0, 128
        %435 = vxpose.xlu0.c.b16.end [8/8] 0, 128
        %v436 = vpop.trf.xlu0
        %v437 = vpop.trf.xlu0
        %v438 = vpop.trf.xlu0
        %v439 = vpop.trf.xlu0
        %v440 = vpop.trf.xlu0
        %v441 = vpop.trf.xlu0
        %v442 = vpop.trf.xlu0
        %v443 = vpop.trf.xlu0
        %vm444 = vcmask 64512
        %v446 = vsel %vm444, %v436, 0
        %v449 = vsel %vm444, %v437, 0
        %v452 = vsel %vm444, %v438, 0
        %v455 = vsel %vm444, %v439, 0
        %v458 = vsel %vm444, %v440, 0
        %v461 = vsel %vm444, %v441, 0
        %v464 = vsel %vm444, %v442, 0
        %v467 = vsel %vm444, %v443, 0
        %vm469 = vcmask 1043456
        %v471 = vsel %vm469, %v375, 0
        %v474 = vsel %vm469, %v376, 0
        %476 = vmatprep.subr.bf16.mxu0 %v474
        %477 = vmatpush1.bf16.msra.mxu0 %v471
        %478 = vmatprep.subr.bf16.mxu0 0
        %479 = vmatpush1.bf16.msra.mxu0 0
        %480 = vmatprep.subr.bf16.mxu0 0
        %481 = vmatpush1.bf16.msra.mxu0 0
        %482 = vmatprep.subr.bf16.mxu0 0
        %483 = vmatpush1.bf16.msra.mxu0 0
        %484 = vmatprep.subr.bf16.mxu0 0
        %485 = vmatpush1.bf16.msra.mxu0 0
        %486 = vmatprep.subr.bf16.mxu0 0
        %487 = vmatpush1.bf16.msra.mxu0 0
        %488 = vmatprep.subr.bf16.mxu0 0
        %489 = vmatpush1.bf16.msra.mxu0 0
        %490 = vmatprep.subr.bf16.mxu0 0
        %491 = vmatpush1.bf16.msra.mxu0 0
        %492 = vmatprep.subr.bf16.mxu0 0
        %493 = vmatpush1.bf16.msra.mxu0 0
        %494 = vmatprep.subr.bf16.mxu0 0
        %495 = vmatpush1.bf16.msra.mxu0 0
        %496 = vmatprep.subr.bf16.mxu0 0
        %497 = vmatpush1.bf16.msra.mxu0 0
        %498 = vmatprep.subr.bf16.mxu0 0
        %499 = vmatpush1.bf16.msra.mxu0 0
        %500 = vmatprep.subr.bf16.mxu0 0
        %501 = vmatpush1.bf16.msra.mxu0 0
        %502 = vmatprep.subr.bf16.mxu0 0
        %503 = vmatpush1.bf16.msra.mxu0 0
        %504 = vmatprep.subr.bf16.mxu0 0
        %505 = vmatpush1.bf16.msra.mxu0 0
        %506 = vmatprep.subr.bf16.mxu0 0
        %507 = vmatpush1.bf16.msra.mxu0 0
        %508 = vmatprep.mubr.bf16.mxu0 0
        %509 = vmatmul.mubr.bf16.gmra.mrb[0].mxu0 %v446
        %v510 = vpop.f32.mrb[0].mxu0
        %v511 = vadd.f32 0.0, %v510
        %v512 = vpop.f32.mrb[0].mxu0
        %v513 = vadd.f32 0.0, %v512
        %v514 = vpop.f32.mrb[0].mxu0
        %v515 = vadd.f32 0.0, %v514
        %v516 = vpop.f32.mrb[0].mxu0
        %v517 = vadd.f32 0.0, %v516
        %518 = vmatprep.mubr.bf16.mxu0 0
        %519 = vmatmul.mubr.bf16.gmra.mrb[0].mxu0 %v449
        %v520 = vpop.f32.mrb[0].mxu0
        %v521 = vadd.f32 0.0, %v520
        %v522 = vpop.f32.mrb[0].mxu0
        %v523 = vadd.f32 0.0, %v522
        %v524 = vpop.f32.mrb[0].mxu0
        %v525 = vadd.f32 0.0, %v524
        %v526 = vpop.f32.mrb[0].mxu0
        %v527 = vadd.f32 0.0, %v526
        %528 = vmatprep.mubr.bf16.mxu0 0
        %529 = vmatmul.mubr.bf16.gmra.mrb[0].mxu0 %v452
        %v530 = vpop.f32.mrb[0].mxu0
        %v531 = vadd.f32 0.0, %v530
        %v532 = vpop.f32.mrb[0].mxu0
        %v533 = vadd.f32 0.0, %v532
        %v534 = vpop.f32.mrb[0].mxu0
        %v535 = vadd.f32 0.0, %v534
        %v536 = vpop.f32.mrb[0].mxu0
        %v537 = vadd.f32 0.0, %v536
        %538 = vmatprep.mubr.bf16.mxu0 0
        %539 = vmatmul.mubr.bf16.gmra.mrb[0].mxu0 %v455
        %v540 = vpop.f32.mrb[0].mxu0
        %v541 = vadd.f32 0.0, %v540
        %v542 = vpop.f32.mrb[0].mxu0
        %v543 = vadd.f32 0.0, %v542
        %v544 = vpop.f32.mrb[0].mxu0
        %v545 = vadd.f32 0.0, %v544
        %v546 = vpop.f32.mrb[0].mxu0
        %v547 = vadd.f32 0.0, %v546
        %548 = vmatprep.mubr.bf16.mxu0 0
        %549 = vmatmul.mubr.bf16.gmra.mrb[0].mxu0 %v458
        %v550 = vpop.f32.mrb[0].mxu0
        %v551 = vadd.f32 0.0, %v550
        %v552 = vpop.f32.mrb[0].mxu0
        %v553 = vadd.f32 0.0, %v552
        %v554 = vpop.f32.mrb[0].mxu0
        %v555 = vadd.f32 0.0, %v554
        %v556 = vpop.f32.mrb[0].mxu0
        %v557 = vadd.f32 0.0, %v556
        %558 = vmatprep.mubr.bf16.mxu0 0
        %559 = vmatmul.mubr.bf16.gmra.mrb[0].mxu0 %v461
        %v560 = vpop.f32.mrb[0].mxu0
        %v561 = vadd.f32 0.0, %v560
        %v562 = vpop.f32.mrb[0].mxu0
        %v563 = vadd.f32 0.0, %v562
        %v564 = vpop.f32.mrb[0].mxu0
        %v565 = vadd.f32 0.0, %v564
        %v566 = vpop.f32.mrb[0].mxu0
        %v567 = vadd.f32 0.0, %v566
        %568 = vmatprep.mubr.bf16.mxu0 0
        %569 = vmatmul.mubr.bf16.gmra.mrb[0].mxu0 %v464
        %v570 = vpop.f32.mrb[0].mxu0
        %v571 = vadd.f32 0.0, %v570
        %v572 = vpop.f32.mrb[0].mxu0
        %v573 = vadd.f32 0.0, %v572
        %v574 = vpop.f32.mrb[0].mxu0
        %v575 = vadd.f32 0.0, %v574
        %v576 = vpop.f32.mrb[0].mxu0
        %v577 = vadd.f32 0.0, %v576
        %578 = vmatprep.mubr.bf16.mxu0 0
        %579 = vmatmul.mubr.bf16.gmra.mrb[0].mxu0 %v467
        %v580 = vpop.f32.mrb[0].mxu0
        %v581 = vadd.f32 0.0, %v580
        %v582 = vpop.f32.mrb[0].mxu0
        %v583 = vadd.f32 0.0, %v582
        %v584 = vpop.f32.mrb[0].mxu0
        %v585 = vadd.f32 0.0, %v584
        %v586 = vpop.f32.mrb[0].mxu0
        %v587 = vadd.f32 0.0, %v586
        %588 = vdwg.mxu0
        %v589 = vmax.f32 %v511, %v513
        %590 = vmax.xlane.f32.xlu0 %v589
        %v591 = vpop.xlane.xlu0 %590
        %v592 = vmax.f32 %v515, %v517
        %593 = vmax.xlane.f32.xlu0 %v592
        %v594 = vpop.xlane.xlu0 %593
        %v595 = vmax.f32 %v521, %v523
        %596 = vmax.xlane.f32.xlu0 %v595
        %v597 = vpop.xlane.xlu0 %596
        %v598 = vmax.f32 %v525, %v527
        %599 = vmax.xlane.f32.xlu0 %v598
        %v600 = vpop.xlane.xlu0 %599
        %v601 = vmax.f32 %v531, %v533
        %602 = vmax.xlane.f32.xlu0 %v601
        %v603 = vpop.xlane.xlu0 %602
        %v604 = vmax.f32 %v535, %v537
        %605 = vmax.xlane.f32.xlu0 %v604
        %v606 = vpop.xlane.xlu0 %605
        %v607 = vmax.f32 %v541, %v543
        %608 = vmax.xlane.f32.xlu0 %v607
        %v609 = vpop.xlane.xlu0 %608
        %v610 = vmax.f32 %v545, %v547
        %611 = vmax.xlane.f32.xlu0 %v610
        %v612 = vpop.xlane.xlu0 %611
        %v613 = vmax.f32 %v551, %v553
        %614 = vmax.xlane.f32.xlu0 %v613
        %v615 = vpop.xlane.xlu0 %614
        %v616 = vmax.f32 %v555, %v557
        %617 = vmax.xlane.f32.xlu0 %v616
        %v618 = vpop.xlane.xlu0 %617
        %v619 = vmax.f32 %v561, %v563
        %620 = vmax.xlane.f32.xlu0 %v619
        %v621 = vpop.xlane.xlu0 %620
        %v622 = vmax.f32 %v565, %v567
        %623 = vmax.xlane.f32.xlu0 %v622
        %v624 = vpop.xlane.xlu0 %623
        %v625 = vmax.f32 %v571, %v573
        %626 = vmax.xlane.f32.xlu0 %v625
        %v627 = vpop.xlane.xlu0 %626
        %v628 = vmax.f32 %v575, %v577
        %629 = vmax.xlane.f32.xlu0 %v628
        %v630 = vpop.xlane.xlu0 %629
        %v631 = vmax.f32 %v581, %v583
        %632 = vmax.xlane.f32.xlu0 %v631
        %v633 = vpop.xlane.xlu0 %632
        %v634 = vmax.f32 %v585, %v587
        %635 = vmax.xlane.f32.xlu0 %v634
        %v636 = vpop.xlane.xlu0 %635
        %v637 = vsub.f32 %v511, %v591
        %v638 = vsub.f32 %v513, %v591
        %v639 = vsub.f32 %v515, %v594
        %v640 = vsub.f32 %v517, %v594
        %v641 = vsub.f32 %v521, %v597
        %v642 = vsub.f32 %v523, %v597
        %v643 = vsub.f32 %v525, %v600
        %v644 = vsub.f32 %v527, %v600
        %v645 = vsub.f32 %v531, %v603
        %v646 = vsub.f32 %v533, %v603
        %v647 = vsub.f32 %v535, %v606
        %v648 = vsub.f32 %v537, %v606
        %v649 = vsub.f32 %v541, %v609
        %v650 = vsub.f32 %v543, %v609
        %v651 = vsub.f32 %v545, %v612
        %v652 = vsub.f32 %v547, %v612
        %v653 = vsub.f32 %v551, %v615
        %v654 = vsub.f32 %v553, %v615
        %v655 = vsub.f32 %v555, %v618
        %v656 = vsub.f32 %v557, %v618
        %v657 = vsub.f32 %v561, %v621
        %v658 = vsub.f32 %v563, %v621
        %v659 = vsub.f32 %v565, %v624
        %v660 = vsub.f32 %v567, %v624
        %v661 = vsub.f32 %v571, %v627
        %v662 = vsub.f32 %v573, %v627
        %v663 = vsub.f32 %v575, %v630
        %v664 = vsub.f32 %v577, %v630
        %v665 = vsub.f32 %v581, %v633
        %v666 = vsub.f32 %v583, %v633
        %v667 = vsub.f32 %v585, %v636
        %v668 = vsub.f32 %v587, %v636
        %v669 = vmul.f32 %v637, 1.442695
        %v670 = vpow.pop %v669
        %v671 = vmul.f32 %v638, 1.442695
        %v672 = vpow.pop %v671
        %v673 = vmul.f32 %v639, 1.442695
        %v674 = vpow.pop %v673
        %v675 = vmul.f32 %v640, 1.442695
        %v676 = vpow.pop %v675
        %v677 = vmul.f32 %v641, 1.442695
        %v678 = vpow.pop %v677
        %v679 = vmul.f32 %v642, 1.442695
        %v680 = vpow.pop %v679
        %v681 = vmul.f32 %v643, 1.442695
        %v682 = vpow.pop %v681
        %v683 = vmul.f32 %v644, 1.442695
        %v684 = vpow.pop %v683
        %v685 = vmul.f32 %v645, 1.442695
        %v686 = vpow.pop %v685
        %v687 = vmul.f32 %v646, 1.442695
        %v688 = vpow.pop %v687
        %v689 = vmul.f32 %v647, 1.442695
        %v690 = vpow.pop %v689
        %v691 = vmul.f32 %v648, 1.442695
        %v692 = vpow.pop %v691
        %v693 = vmul.f32 %v649, 1.442695
        %v694 = vpow.pop %v693
        %v695 = vmul.f32 %v650, 1.442695
        %v696 = vpow.pop %v695
        %v697 = vmul.f32 %v651, 1.442695
        %v698 = vpow.pop %v697
        %v699 = vmul.f32 %v652, 1.442695
        %v700 = vpow.pop %v699
        %v701 = vmul.f32 %v653, 1.442695
        %v702 = vpow.pop %v701
        %v703 = vmul.f32 %v654, 1.442695
        %v704 = vpow.pop %v703
        %v705 = vmul.f32 %v655, 1.442695
        %v706 = vpow.pop %v705
        %v707 = vmul.f32 %v656, 1.442695
        %v708 = vpow.pop %v707
        %v709 = vmul.f32 %v657, 1.442695
        %v710 = vpow.pop %v709
        %v711 = vmul.f32 %v658, 1.442695
        %v712 = vpow.pop %v711
        %v713 = vmul.f32 %v659, 1.442695
        %v714 = vpow.pop %v713
        %v715 = vmul.f32 %v660, 1.442695
        %v716 = vpow.pop %v715
        %v717 = vmul.f32 %v661, 1.442695
        %v718 = vpow.pop %v717
        %v719 = vmul.f32 %v662, 1.442695
        %v720 = vpow.pop %v719
        %v721 = vmul.f32 %v663, 1.442695
        %v722 = vpow.pop %v721
        %v723 = vmul.f32 %v664, 1.442695
        %v724 = vpow.pop %v723
        %v725 = vmul.f32 %v665, 1.442695
        %v726 = vpow.pop %v725
        %v727 = vmul.f32 %v666, 1.442695
        %v728 = vpow.pop %v727
        %v729 = vmul.f32 %v667, 1.442695
        %v730 = vpow.pop %v729
        %v731 = vmul.f32 %v668, 1.442695
        %v732 = vpow.pop %v731
        %v733 = vadd.f32 %v670, %v672
        %734 = vadd.xlane.f32.xlu0 %v733
        %v735 = vpop.xlane.xlu0 %734
        %v736 = vadd.f32 %v674, %v676
        %737 = vadd.xlane.f32.xlu0 %v736
        %v738 = vpop.xlane.xlu0 %737
        %v739 = vadd.f32 %v678, %v680
        %740 = vadd.xlane.f32.xlu0 %v739
        %v741 = vpop.xlane.xlu0 %740
        %v742 = vadd.f32 %v682, %v684
        %743 = vadd.xlane.f32.xlu0 %v742
        %v744 = vpop.xlane.xlu0 %743
        %v745 = vadd.f32 %v686, %v688
        %746 = vadd.xlane.f32.xlu0 %v745
        %v747 = vpop.xlane.xlu0 %746
        %v748 = vadd.f32 %v690, %v692
        %749 = vadd.xlane.f32.xlu0 %v748
        %v750 = vpop.xlane.xlu0 %749
        %v751 = vadd.f32 %v694, %v696
        %752 = vadd.xlane.f32.xlu0 %v751
        %v753 = vpop.xlane.xlu0 %752
        %v754 = vadd.f32 %v698, %v700
        %755 = vadd.xlane.f32.xlu0 %v754
        %v756 = vpop.xlane.xlu0 %755
        %v757 = vadd.f32 %v702, %v704
        %758 = vadd.xlane.f32.xlu0 %v757
        %v759 = vpop.xlane.xlu0 %758
        %v760 = vadd.f32 %v706, %v708
        %761 = vadd.xlane.f32.xlu0 %v760
        %v762 = vpop.xlane.xlu0 %761
        %v763 = vadd.f32 %v710, %v712
        %764 = vadd.xlane.f32.xlu0 %v763
        %v765 = vpop.xlane.xlu0 %764
        %v766 = vadd.f32 %v714, %v716
        %767 = vadd.xlane.f32.xlu0 %v766
        %v768 = vpop.xlane.xlu0 %767
        %v769 = vadd.f32 %v718, %v720
        %770 = vadd.xlane.f32.xlu0 %v769
        %v771 = vpop.xlane.xlu0 %770
        %v772 = vadd.f32 %v722, %v724
        %773 = vadd.xlane.f32.xlu0 %v772
        %v774 = vpop.xlane.xlu0 %773
        %v775 = vadd.f32 %v726, %v728
        %776 = vadd.xlane.f32.xlu0 %v775
        %v777 = vpop.xlane.xlu0 %776
        %v778 = vadd.f32 %v730, %v732
        %779 = vadd.xlane.f32.xlu0 %v778
        %v780 = vpop.xlane.xlu0 %779
        %v781 = vrcp.pop %v735
        %v782 = vrcp.pop %v738
        %v783 = vrcp.pop %v741
        %v784 = vrcp.pop %v744
        %v785 = vrcp.pop %v747
        %v786 = vrcp.pop %v750
        %v787 = vrcp.pop %v753
        %v788 = vrcp.pop %v756
        %v789 = vrcp.pop %v759
        %v790 = vrcp.pop %v762
        %v791 = vrcp.pop %v765
        %v792 = vrcp.pop %v768
        %v793 = vrcp.pop %v771
        %v794 = vrcp.pop %v774
        %v795 = vrcp.pop %v777
        %v796 = vrcp.pop %v780
        %v797 = vmul.f32 %v670, %v781
        %v798 = vmul.f32 %v672, %v781
        %v799 = vmul.f32 %v674, %v782
        %v800 = vmul.f32 %v676, %v782
        %v801 = vmul.f32 %v678, %v783
        %v802 = vmul.f32 %v680, %v783
        %v803 = vmul.f32 %v682, %v784
        %v804 = vmul.f32 %v684, %v784
        %v805 = vmul.f32 %v686, %v785
        %v806 = vmul.f32 %v688, %v785
        %v807 = vmul.f32 %v690, %v786
        %v808 = vmul.f32 %v692, %v786
        %v809 = vmul.f32 %v694, %v787
        %v810 = vmul.f32 %v696, %v787
        %v811 = vmul.f32 %v698, %v788
        %v812 = vmul.f32 %v700, %v788
        %v813 = vmul.f32 %v702, %v789
        %v814 = vmul.f32 %v704, %v789
        %v815 = vmul.f32 %v706, %v790
        %v816 = vmul.f32 %v708, %v790
        %v817 = vmul.f32 %v710, %v791
        %v818 = vmul.f32 %v712, %v791
        %v819 = vmul.f32 %v714, %v792
        %v820 = vmul.f32 %v716, %v792
        %v821 = vmul.f32 %v718, %v793
        %v822 = vmul.f32 %v720, %v793
        %v823 = vmul.f32 %v722, %v794
        %v824 = vmul.f32 %v724, %v794
        %v825 = vmul.f32 %v726, %v795
        %v826 = vmul.f32 %v728, %v795
        %v827 = vmul.f32 %v730, %v796
        %v828 = vmul.f32 %v732, %v796
        %v829 = vpack.c.bf16 %v799, %v797
        %v830 = vpack.c.bf16 %v800, %v798
        %v831 = vpack.c.bf16 %v803, %v801
        %v832 = vpack.c.bf16 %v804, %v802
        %v833 = vpack.c.bf16 %v807, %v805
        %v834 = vpack.c.bf16 %v808, %v806
        %v835 = vpack.c.bf16 %v811, %v809
        %v836 = vpack.c.bf16 %v812, %v810
        %v837 = vpack.c.bf16 %v815, %v813
        %v838 = vpack.c.bf16 %v816, %v814
        %v839 = vpack.c.bf16 %v819, %v817
        %v840 = vpack.c.bf16 %v820, %v818
        %v841 = vpack.c.bf16 %v823, %v821
        %v842 = vpack.c.bf16 %v824, %v822
        %v843 = vpack.c.bf16 %v827, %v825
        %v844 = vpack.c.bf16 %v828, %v826
        %845 = vmatprep.subr.bf16.mxu0 %v830
        %846 = vmatpush1.bf16.xpose.msra.mxu0 %v829
        %847 = vmatprep.subr.bf16.mxu0 %v832
        %848 = vmatpush1.bf16.xpose.msra.mxu0 %v831
        %849 = vmatprep.subr.bf16.mxu0 %v834
        %850 = vmatpush1.bf16.xpose.msra.mxu0 %v833
        %851 = vmatprep.subr.bf16.mxu0 %v836
        %852 = vmatpush1.bf16.xpose.msra.mxu0 %v835
        %853 = vmatprep.subr.bf16.mxu0 %v838
        %854 = vmatpush1.bf16.xpose.msra.mxu0 %v837
        %855 = vmatprep.subr.bf16.mxu0 %v840
        %856 = vmatpush1.bf16.xpose.msra.mxu0 %v839
        %857 = vmatprep.subr.bf16.mxu0 %v842
        %858 = vmatpush1.bf16.xpose.msra.mxu0 %v841
        %859 = vmatprep.subr.bf16.mxu0 %v844
        %860 = vmatpush1.bf16.xpose.msra.mxu0 %v843
        %861 = vmatprep.subr.bf16.mxu0 0
        %862 = vmatpush1.bf16.xpose.msra.mxu0 0
        %863 = vmatprep.subr.bf16.mxu0 0
        %864 = vmatpush1.bf16.xpose.msra.mxu0 0
        %865 = vmatprep.subr.bf16.mxu0 0
        %866 = vmatpush1.bf16.xpose.msra.mxu0 0
        %867 = vmatprep.subr.bf16.mxu0 0
        %868 = vmatpush1.bf16.xpose.msra.mxu0 0
        %869 = vmatprep.subr.bf16.mxu0 0
        %870 = vmatpush1.bf16.xpose.msra.mxu0 0
        %871 = vmatprep.subr.bf16.mxu0 0
        %872 = vmatpush1.bf16.xpose.msra.mxu0 0
        %873 = vmatprep.subr.bf16.mxu0 0
        %874 = vmatpush1.bf16.xpose.msra.mxu0 0
        %875 = vmatprep.subr.bf16.mxu0 0
        %876 = vmatpush1.bf16.xpose.msra.mxu0 0
        %877 = vmatprep.mubr.bf16.mxu0 %v378
        %878 = vmatmul.mubr.bf16.gmra.mrb[0].mxu0 %v377
        %v879 = vpop.f32.mrb[0].mxu0
        %v880 = vadd.f32 0.0, %v879
        %v881 = vpop.f32.mrb[0].mxu0
        %v882 = vpop.f32.mrb[0].mxu0
        %v883 = vpop.f32.mrb[0].mxu0
        %884 = vdwg.mxu0
        %v885 = vld [vmem:[%s5] sm:$0x3]
        %v886 = vpack.c.bf16 %v880, %v880
        %v888 = vsel %vm444, %v885, 0
        %v891 = vsel %vm469, %v886, 0
        %893 = vmatprep.subr.bf16.mxu0 0
        %894 = vmatpush1.bf16.msra.mxu0 %v891
        %895 = vmatprep.subr.bf16.mxu0 0
        %896 = vmatpush1.bf16.msra.mxu0 0
        %897 = vmatprep.subr.bf16.mxu0 0
        %898 = vmatpush1.bf16.msra.mxu0 0
        %899 = vmatprep.subr.bf16.mxu0 0
        %900 = vmatpush1.bf16.msra.mxu0 0
        %901 = vmatprep.subr.bf16.mxu0 0
        %902 = vmatpush1.bf16.msra.mxu0 0
        %903 = vmatprep.subr.bf16.mxu0 0
        %904 = vmatpush1.bf16.msra.mxu0 0
        %905 = vmatprep.subr.bf16.mxu0 0
        %906 = vmatpush1.bf16.msra.mxu0 0
        %907 = vmatprep.subr.bf16.mxu0 0
        %908 = vmatpush1.bf16.msra.mxu0 0
        %909 = vmatprep.subr.bf16.mxu0 0
        %910 = vmatpush1.bf16.msra.mxu0 0
        %911 = vmatprep.subr.bf16.mxu0 0
        %912 = vmatpush1.bf16.msra.mxu0 0
        %913 = vmatprep.subr.bf16.mxu0 0
        %914 = vmatpush1.bf16.msra.mxu0 0
        %915 = vmatprep.subr.bf16.mxu0 0
        %916 = vmatpush1.bf16.msra.mxu0 0
        %917 = vmatprep.subr.bf16.mxu0 0
        %918 = vmatpush1.bf16.msra.mxu0 0
        %919 = vmatprep.subr.bf16.mxu0 0
        %920 = vmatpush1.bf16.msra.mxu0 0
        %921 = vmatprep.subr.bf16.mxu0 0
        %922 = vmatpush1.bf16.msra.mxu0 0
        %923 = vmatprep.subr.bf16.mxu0 0
        %924 = vmatpush1.bf16.msra.mxu0 0
        %925 = vmatprep.mubr.bf16.mxu0 0
        %926 = vmatmul.mubr.bf16.gmra.mrb[0].mxu0 %v888
        %v927 = vpop.f32.mrb[0].mxu0
        %v928 = vadd.f32 0.0, %v927
        %v929 = vpop.f32.mrb[0].mxu0
        %v930 = vpop.f32.mrb[0].mxu0
        %v931 = vpop.f32.mrb[0].mxu0
        %932 = vdwg.mxu0
        %s933 = sld [smem:[#allocation2]]
        %v934 = vstv %s933
        %v935 = vmul.f32 %v934, %v928
        %v936 = vadd.f32 %v308, %v935
        %937 = vst [vmem:[%s300] sm:$0xf] %v936
        %s938 = sand.u32 %s184, 1
        %s939 = scalar_lea.sflag [#allocation5], %s938
        %s940 = sand.u32 %s184, 1
        %s941 = smul.addr %s940, 4
        %s942 = scalar_lea.vmem [#allocation6], %s941
        // Predicated region
        $region49: #{tpu_custom_call.1} parent=43 // pred_check
          %p943 = pneg %p194
        $region50: #{tpu_custom_call.1} parent=43 // pred_check_branch
          %945 = sbr.rel (%p943) target = $region52
        $region51: #{tpu_custom_call.1} parent=43 // pred_region
          %s947 = ssub.s32 64, 64
          %948 = vsyncadd %s939, %s947
          %s949 = smul.addr %s28, 2
          %s950 = sadd.s32 %s29, %s949
          %s951 = smul.addr %s950, 64
          %s952 = scalar_lea.hbm %s6, %s951
          %s954 = sshll.u32 %s942, 4
          %s955 = int_to_ptr.vmem [resolvable:$true] %s954
          %957 = dma.vmem_to_hbm [thread:$0]  %s955, 64, %s952, %s939
        $region52: #{tpu_custom_call.1} parent=43 // pred_fallthru
          _
      $region44: #{tpu_custom_call.1} parent=5 // pred_fallthru
        _
      %p958 = scmp.le.s32.totalorder 2, %s19
      // Predicated region
      $region53: #{tpu_custom_call.1} parent=5 // pred_check
        %p959 = pneg %p958
      $region54: #{tpu_custom_call.1} parent=5 // pred_check_branch
        %961 = sbr.rel (%p959) target = $region56
      $region55: #{tpu_custom_call.1} parent=5 // pred_region
        %s962 = ssub.s32 %s19, 2
        // Predicated region
        $region57: #{tpu_custom_call.1} parent=55 // pred_check
          %p963 = pneg %p200
        $region58: #{tpu_custom_call.1} parent=55 // pred_check_branch
          %965 = sbr.rel (%p963) target = $region60
        $region59: #{tpu_custom_call.1} parent=55 // pred_region
          %s966 = sand.u32 %s185, 1
          %s967 = scalar_lea.sflag [#allocation5], %s966
          %s968 = sand.u32 %s185, 1
          %s969 = smul.addr %s968, 4
          %s970 = scalar_lea.vmem [#allocation6], %s969
          %971 = dma.done %s967, 64
        $region60: #{tpu_custom_call.1} parent=55 // pred_fallthru
          _
      $region56: #{tpu_custom_call.1} parent=5 // pred_fallthru
        _
    $region6: #{tpu_custom_call.1} parent=1 // loop_footer
      %s23 = sadd.s32 1, %s19
    $region7: #{tpu_custom_call.1} parent=1 // loop_footer_branch
      %18 = sbr.rel target = $region3
    $region8: #{tpu_custom_call.1} parent=1 // loop_exit
      _
    %972 = vsyncpa [#allocation4], 1
    %s973 = scalar_lea.sflag [#allocation4], 1
    %974 = vsyncpa %s973, 1
    %975 = vsyncpa [#allocation5], 1
    %s976 = scalar_lea.sflag [#allocation5], 1
    %977 = vsyncpa %s976, 1

</llo_original>
